<compile_context>
chip_gen: v7x
topology: tpu7x:2x2x1
jax: 0.10.0
libtpu: 0.0.40
codegen_flags: <defaults>
</compile_context>

<pallas_src>
import jax
import jax.numpy as jnp
from jax import lax
from jax.experimental import pallas as pl
from jax.experimental.pallas import tpu as pltpu


def _round_up(x, m):
    return ((x + m - 1) // m) * m


def _vmem_limit(need_bytes):
    # Scale the tile footprint for Mosaic's internal scratch, keep within the
    # smallest physical VMEM (v7x: 64 MiB) with headroom.
    return int(min(max(need_bytes * 2, 32 << 20), 48 << 20))


# --------------------------------------------------------------------------
# Kernels
# --------------------------------------------------------------------------
def _linear_kernel_weight_resident(x_ref, w_ref, b_ref, o_ref):
    """Fast path: whole weight resident.  x:(tm,K)  w:(N,K)  b:(1,N)f32  o:(tm,N)."""
    acc = lax.dot_general(
        x_ref[...], w_ref[...],
        dimension_numbers=(((1,), (1,)), ((), ())),
        preferred_element_type=jnp.float32)
    o_ref[...] = (acc + b_ref[...]).astype(o_ref.dtype)


def _linear_kernel_f32_out(x_ref, w_ref, b_ref, o_ref):
    """Tiled path, f32 output: accumulate directly into the resident output block."""
    k = pl.program_id(2)

    @pl.when(k == 0)
    def _():
        o_ref[...] = jnp.zeros_like(o_ref)

    o_ref[...] += lax.dot_general(
        x_ref[...], w_ref[...],
        dimension_numbers=(((1,), (1,)), ((), ())),
        preferred_element_type=jnp.float32)

    @pl.when(k == pl.num_programs(2) - 1)
    def _():
        o_ref[...] += b_ref[...]          # bias (f32) added exactly once


def _linear_kernel_acc(x_ref, w_ref, b_ref, o_ref, acc_ref):
    """Tiled path, narrow output dtype: f32 accumulator scratch + finalize cast."""
    k = pl.program_id(2)

    @pl.when(k == 0)
    def _():
        acc_ref[...] = jnp.zeros_like(acc_ref)

    acc_ref[...] += lax.dot_general(
        x_ref[...], w_ref[...],
        dimension_numbers=(((1,), (1,)), ((), ())),
        preferred_element_type=jnp.float32)

    @pl.when(k == pl.num_programs(2) - 1)
    def _():
        o_ref[...] = (acc_ref[...] + b_ref[...]).astype(o_ref.dtype)


# --------------------------------------------------------------------------
# Wrapper
# --------------------------------------------------------------------------
def linear_norm_forward(x, weight, bias, *, tm=512, tn=512, tk=None,
                        compute_dtype=None, weight_resident_bytes=6 << 20):
    """y = x @ weight.T + bias, matching torch.nn.Linear semantics.

    x:      (..., in_dim)
    weight: (out_dim, in_dim)   (PyTorch layout, used as-is)
    bias:   (out_dim,)
    compute_dtype: e.g. jnp.bfloat16 to feed the MXU bf16 operands (f32
        accumulation retained).  None -> keep x's dtype (exact parity).
    """
    out_dim, in_dim = weight.shape
    orig_shape = x.shape
    out_dtype = x.dtype
    x2d = x.reshape(-1, in_dim)
    M, K, N = x2d.shape[0], in_dim, out_dim

    cdtype = jnp.dtype(compute_dtype) if compute_dtype is not None else x2d.dtype
    csize = cdtype.itemsize
    osize = jnp.dtype(out_dtype).itemsize
    if tk is None:
        tk = 2048 if csize <= 2 else 1024

    # Cast operands to the compute dtype once, in the wrapper (bf16 path).
    if x2d.dtype != cdtype:
        x2d = x2d.astype(cdtype)
    w_c = weight if weight.dtype == cdtype else weight.astype(cdtype)
    b_f32 = bias.astype(jnp.float32)

    # ---------------- fast path: whole weight resident in VMEM ----------------
    if N * K * csize <= weight_resident_bytes:
        tm_f = min(tm, _round_up(M, 8))
        while tm_f > 8 and tm_f * K * csize > (4 << 20):   # keep x tile modest
            tm_f //= 2
        tm_f = max(8, _round_up(tm_f, 8))
        Mp = _round_up(M, tm_f)
        # Give megacore (dimension_semantics="parallel") >=2 M tiles when possible.
        if Mp // tm_f < 2 and Mp > 8:
            tm_f = max(8, _round_up(Mp // 2, 8))
            Mp = _round_up(M, tm_f)

        x_p = x2d if Mp == M else jnp.pad(x2d, ((0, Mp - M), (0, 0)))
        b2d = b_f32.reshape(1, N)

        vmem_need = (2 * tm_f * K * csize + 2 * N * K * csize
                     + 2 * tm_f * N * osize + 2 * N * 4)
        cost = pl.CostEstimate(
            flops=2 * M * N * K, transcendentals=0,
            bytes_accessed=M * K * csize + N * K * csize + N * 4 + M * N * osize)

        out = pl.pallas_call(
            _linear_kernel_weight_resident,
            out_shape=jax.ShapeDtypeStruct((Mp, N), out_dtype),
            grid=(Mp // tm_f,),
            in_specs=[
                pl.BlockSpec((tm_f, K), lambda i: (i, 0)),   # x tile
                pl.BlockSpec((N, K), lambda i: (0, 0)),      # full weight, loaded once
                pl.BlockSpec((1, N), lambda i: (0, 0)),      # full bias (f32)
            ],
            out_specs=pl.BlockSpec((tm_f, N), lambda i: (i, 0)),
            compiler_params=pltpu.CompilerParams(
                dimension_semantics=("parallel",),
                vmem_limit_bytes=_vmem_limit(vmem_need)),
            cost_estimate=cost,
        )(x_p, w_c, b2d)

        return out[:M, :].reshape(*orig_shape[:-1], N)

    # ---------------- general tiled path ----------------
    tm = max(8, min(tm, _round_up(M, 8)))
    tn = max(128, min(tn, _round_up(N, 128)))
    tk = max(128, min(tk, _round_up(K, 128)))
    Mp, Kp, Np = _round_up(M, tm), _round_up(K, tk), _round_up(N, tn)

    # Zero-pad to tile multiples (no-op for aligned shapes; K pads contribute 0).
    # TODO(synk): mask the ragged final K tile in-kernel instead of padding to
    # avoid the HBM round-trip for large unaligned activations.
    x_p = x2d if (Mp == M and Kp == K) else jnp.pad(x2d, ((0, Mp - M), (0, Kp - K)))
    w_p = w_c if (Np == N and Kp == K) else jnp.pad(w_c, ((0, Np - N), (0, Kp - K)))
    b_p = b_f32 if Np == N else jnp.pad(b_f32, (0, Np - N))
    b2d = b_p.reshape(1, Np)

    grid = (Mp // tm, Np // tn, Kp // tk)
    f32_out = jnp.dtype(out_dtype) == jnp.float32
    kernel = _linear_kernel_f32_out if f32_out else _linear_kernel_acc
    scratch = [] if f32_out else [pltpu.VMEM((tm, tn), jnp.float32)]

    vmem_need = (2 * tm * tk * csize + 2 * tn * tk * csize
                 + 2 * tm * tn * osize + 2 * tn * 4
                 + (0 if f32_out else tm * tn * 4))
    cost = pl.CostEstimate(
        flops=2 * M * N * K, transcendentals=0,
        bytes_accessed=(M * K * csize * (Np // tn)       # x re-read per N tile
                        + N * K * csize * (Mp // tm)     # w re-read per M tile
                        + N * 4 + M * N * osize))

    out = pl.pallas_call(
        kernel,
        out_shape=jax.ShapeDtypeStruct((Mp, Np), out_dtype),
        grid=grid,
        in_specs=[
            pl.BlockSpec((tm, tk), lambda i, j, k: (i, k)),   # x tile
            pl.BlockSpec((tn, tk), lambda i, j, k: (j, k)),   # weight tile (out,in)
            pl.BlockSpec((1, tn), lambda i, j, k: (0, j)),    # bias tile (f32)
        ],
        out_specs=pl.BlockSpec((tm, tn), lambda i, j, k: (i, j)),
        scratch_shapes=scratch,
        compiler_params=pltpu.CompilerParams(
            dimension_semantics=("parallel", "parallel", "arbitrary"),
            vmem_limit_bytes=_vmem_limit(vmem_need)),
        cost_estimate=cost,
    )(x_p, w_p, b2d)

    return out[:M, :N].reshape(*orig_shape[:-1], N)


# --------------------------------------------------------------------------
# Parameter init mirroring the PyTorch module
# --------------------------------------------------------------------------
def init_linear_norm_params(key, in_dim, out_dim, w_init_gain="linear"):
    """weight: xavier_uniform_ (gain=calculate_gain('linear')=1.0);
    bias: torch.nn.Linear default U(-1/sqrt(in_dim), 1/sqrt(in_dim))."""
    kw, kb = jax.random.split(key)
    gain = 1.0
    bound_w = gain * (6.0 / (in_dim + out_dim)) ** 0.5
    weight = jax.random.uniform(
        kw, (out_dim, in_dim), jnp.float32, minval=-bound_w, maxval=bound_w)
    bound_b = 1.0 / (in_dim ** 0.5)
    bias = jax.random.uniform(
        kb, (out_dim,), jnp.float32, minval=-bound_b, maxval=bound_b)
    return weight, bias


if __name__ == "__main__":
    key = jax.random.PRNGKey(0)
    k_x, k_p = jax.random.split(key)

    # 1) Small shape consistent with the module (fast weight-resident path, exact f32).
    batch, seq, in_dim, out_dim = 2, 8, 32, 16
    x = jax.random.normal(k_x, (batch, seq, in_dim), jnp.float32)
    weight, bias = init_linear_norm_params(k_p, in_dim, out_dim)
    y = jax.block_until_ready(linear_norm_forward(x, weight, bias))
    y_ref = x @ weight.T + bias
    assert y.shape == (batch, seq, out_dim)
    assert jnp.allclose(y, y_ref, atol=1e-5, rtol=1e-5)

    # 2) Exercise the general tiled path (multi-point grid incl. K reduction),
    #    f32 in-place-output kernel.  weight_resident_bytes=0 forces the tiled path.
    Mb, Kb, Nb = 256, 512, 384
    xb = jax.random.normal(jax.random.PRNGKey(1), (Mb, Kb), jnp.float32)
    wb, bb = init_linear_norm_params(jax.random.PRNGKey(2), Kb, Nb)
    yb = jax.block_until_ready(linear_norm_forward(
        xb, wb, bb, tm=128, tn=128, tk=128, weight_resident_bytes=0))
    yb_ref = xb @ wb.T + bb
    assert jnp.allclose(yb, yb_ref, atol=1e-3, rtol=1e-3)

    # 3) bf16-operand path (f32 accumulation / f32 bias add) — relaxed tolerance.
    Mc, Kc, Nc = 512, 256, 256
    xc = jax.random.normal(jax.random.PRNGKey(3), (Mc, Kc), jnp.float32)
    wc, bc = init_linear_norm_params(jax.random.PRNGKey(4), Kc, Nc)
    yc = jax.block_until_ready(linear_norm_forward(
        xc, wc, bc, compute_dtype=jnp.bfloat16))
    yc_ref = jnp.dot(xc.astype(jnp.bfloat16), wc.astype(jnp.bfloat16).T,
                     preferred_element_type=jnp.float32) + bc
    assert jnp.allclose(yc, yc_ref, atol=1e-2, rtol=1e-2)

    print("KERNEL_OK")
</pallas_src>

<mosaic_0001>
module attributes {stable_mosaic.version = 11 : i64} {
  func.func @_linear_kernel_weight_resident(%arg0: i32, %arg1: memref<8x32xf32, #tpu.memory_space<vmem>>, %arg2: memref<16x32xf32, #tpu.memory_space<vmem>>, %arg3: memref<1x16xf32, #tpu.memory_space<vmem>>, %arg4: memref<8x16xf32, #tpu.memory_space<vmem>>) attributes {dimension_semantics = [#tpu.dimension_semantics<parallel>], iteration_bounds = array<i64: 2>, scalar_prefetch = 0 : i64, scratch_operands = 0 : i64, tpu.core_type = #tpu.core_type<tc>, window_params = [{transform_indices = @transform_0, window_bounds = array<i64: 8, 32>}, {pipeline_mode = #tpu.pipeline_mode<synchronous>, transform_indices = @transform_1, window_bounds = array<i64: 16, 32>}, {pipeline_mode = #tpu.pipeline_mode<synchronous>, transform_indices = @transform_2, window_bounds = array<i64: 1, 16>}, {transform_indices = @transform_3, window_bounds = array<i64: 8, 16>}]} {
    %c0 = arith.constant 0 : index
    %c0_0 = arith.constant 0 : index
    %0 = vector.load %arg1[%c0, %c0_0] : memref<8x32xf32, #tpu.memory_space<vmem>>, vector<8x32xf32>
    %c0_1 = arith.constant 0 : index
    %c0_2 = arith.constant 0 : index
    %1 = vector.load %arg2[%c0_1, %c0_2] : memref<16x32xf32, #tpu.memory_space<vmem>>, vector<16x32xf32>
    %cst = arith.constant dense<0.000000e+00> : vector<8x16xf32>
    %2 = tpu.matmul %0, %1, %cst {dimension_numbers = #tpu.dot_dimension_numbers<[1], [1], [0], [0], [0, 0, 1, 0], [], []>} : vector<8x32xf32>, vector<16x32xf32>, vector<8x16xf32> -> vector<8x16xf32>
    %c0_3 = arith.constant 0 : index
    %c0_4 = arith.constant 0 : index
    %3 = vector.load %arg3[%c0_3, %c0_4] : memref<1x16xf32, #tpu.memory_space<vmem>>, vector<1x16xf32>
    %4 = vector.broadcast %3 : vector<1x16xf32> to vector<8x16xf32>
    %5 = arith.addf %2, %4 : vector<8x16xf32>
    %c0_5 = arith.constant 0 : index
    %c0_6 = arith.constant 0 : index
    %6 = vector.load %arg4[%c0_5, %c0_6] : memref<8x16xf32, #tpu.memory_space<vmem>>, vector<8x16xf32>
    tpu.vector_store %arg4[%c0_5, %c0_6], %5 {strides = array<i32>} : memref<8x16xf32, #tpu.memory_space<vmem>>, vector<8x16xf32>,
    return
  }
  func.func @transform_0(%arg0: i32) -> (i32, i32) {
    %c0_i32 = arith.constant 0 : i32
    %c0_i32_0 = arith.constant 0 : i32
    return %arg0, %c0_i32 : i32, i32
  }
  func.func @transform_1(%arg0: i32) -> (i32, i32) {
    %c0_i32 = arith.constant 0 : i32
    %c0_i32_0 = arith.constant 0 : i32
    %c0_i32_1 = arith.constant 0 : i32
    return %c0_i32, %c0_i32_0 : i32, i32
  }
  func.func @transform_2(%arg0: i32) -> (i32, i32) {
    %c0_i32 = arith.constant 0 : i32
    %c0_i32_0 = arith.constant 0 : i32
    %c0_i32_1 = arith.constant 0 : i32
    return %c0_i32, %c0_i32_0 : i32, i32
  }
  func.func @transform_3(%arg0: i32) -> (i32, i32) {
    %c0_i32 = arith.constant 0 : i32
    %c0_i32_0 = arith.constant 0 : i32
    return %arg0, %c0_i32 : i32, i32
  }
}

</mosaic_0001>

<llo_original>
// kernel: tpu_custom_call.1
$region0: #{tpu_custom_call.1}
  #allocation0 [shape = 'u32[]', space=smem, size = 0x4, offset = 0x4, fixed_abs, tag = 'smem constant byte address 0x4 - core index']
  #allocation1 [shape = 'u32[144,128]{1,0:T(1,128)}', space=vmem, size = 0x12000, scoped, tag = 'internal scratch']
  %s0 = inlined_call_operand.hbm [shape: f32[16,32], index: 0, kind: input, shape index: {}]
  %s1 = inlined_call_operand.hbm [shape: f32[16,32], index: 1, kind: input, shape index: {}]
  %s2 = inlined_call_operand.vmem [shape: f32[1,16], index: 2, kind: input, shape index: {}]
  %s3 = inlined_call_operand.hbm [shape: f32[16,16], index: 3, kind: output, shape index: {}]
  %s4 = sld [smem:[#allocation0]]
  $region53: #{tpu_custom_call.1} parent=0
    _
  %s6 = ssub.s32 1, %s4
  %s7 = scalar_select 0, %s6, %s4
  $region1: #{tpu_custom_call.1} parent=0
    #allocation2 [shape = 'u8[8192]{0}', space=vmem, size = 0x2000, scoped, tag = 'input window, operand 0']
    #allocation3 [shape = 's32[2]{0}', space=sflag, size = 0x8, scoped, tag = 'scoped memory for tpu_custom_call.1']
    #allocation4 [shape = 's32[2]{0}', space=sflag, size = 0x8, scoped, tag = 'scoped memory for tpu_custom_call.1']
    #allocation5 [shape = 'u8[8192]{0}', space=vmem, size = 0x2000, scoped, tag = 'input window, operand 1, single buffered']
    #allocation6 [shape = 's32[1]{0}', space=sflag, size = 0x4, scoped, tag = 'scoped memory for tpu_custom_call.1']
    #allocation7 [shape = 'u8[8192]{0}', space=vmem, size = 0x2000, scoped, tag = 'output window, operand 0']
    %8 = vsyncpa [#allocation3], 0
    %s9 = scalar_lea.sflag [#allocation3], 1
    %10 = vsyncpa %s9, 0
    %11 = vsyncpa [#allocation6], 0
    %12 = vsyncpa [#allocation4], 0
    %s13 = scalar_lea.sflag [#allocation4], 1
    %14 = vsyncpa %s13, 0
    loop: start=0, step=1, limit=4
    $region2: #{tpu_custom_call.1} parent=1 // loop_pre_header
      _
    $region3: #{tpu_custom_call.1} parent=1 // loop_header
      %s16 = sphi 0, %s20
      %p17 = scmp.ge.s32.totalorder %s16, 4
      %s26 = sphi 0, %s28
      %s29 = sphi 0, %s26
      %s30 = sphi 0, %s29
      %s46 = sphi 0, %s30
      %s50 = sphi 0, %s50
      %s52 = sphi 0, %s50
      %s53 = sphi 0, %s52
      %s67 = sphi 0, %s53
      %s71 = sphi 0, %s71
      %s73 = sphi 0, %s71
      %s74 = sphi 0, %s73
      %s88 = sphi 0, %s74
      %s94 = sphi 0, %s96
      %s97 = sphi 0, %s94
      %s98 = sphi 0, %s97
      %s114 = sphi 0, %s98
    $region4: #{tpu_custom_call.1} parent=1 // loop_header_branch
      %19 = sbr.rel (%p17) target = $region8
    $region5: #{tpu_custom_call.1} parent=1 // loop_body
      %s21 = ssub.s32 %s16, 1
      %s22 = ssub.s32 %s16, 2
      %s23 = sadd.s32 %s16, 1
      %s24 = ssub.s32 %s16, %s23
      %p25 = scmp.eq.s32.totalorder %s24, 0
      %s27 = sadd.s32 %s26, 1
      %s28 = scalar_select %p25, %s26, %s27
      %p31 = pneg %p25
      %p32 = scmp.eq.s32.totalorder %s16, 1
      %p33 = por %p31, %p32
      %p34 = scmp.ne.s32.totalorder %s26, %s29
      %p35 = scmp.eq.s32.totalorder %s16, 0
      %p36 = por %p34, %p35
      %p37 = scmp.ne.s32.totalorder %s26, %s29
      %p38 = scmp.eq.s32.totalorder %s21, 1
      %p39 = por %p37, %p38
      %p40 = scmp.ne.s32.totalorder %s29, %s30
      %p41 = scmp.eq.s32.totalorder %s21, 0
      %p42 = por %p40, %p41
      %p43 = scmp.ne.s32.totalorder %s29, %s30
      %p44 = scmp.eq.s32.totalorder %s22, 1
      %p45 = por %p43, %p44
      %p47 = scmp.ne.s32.totalorder %s30, %s46
      %p48 = scmp.eq.s32.totalorder %s22, 0
      %p49 = por %p47, %p48
      %s51 = sadd.s32 %s50, 1
      %p54 = scmp.eq.s32.totalorder %s16, 1
      %p55 = scmp.ne.s32.totalorder %s50, %s52
      %p56 = scmp.eq.s32.totalorder %s16, 0
      %p57 = por %p55, %p56
      %p58 = scmp.ne.s32.totalorder %s50, %s52
      %p59 = scmp.eq.s32.totalorder %s21, 1
      %p60 = por %p58, %p59
      %p61 = scmp.ne.s32.totalorder %s52, %s53
      %p62 = scmp.eq.s32.totalorder %s21, 0
      %p63 = por %p61, %p62
      %p64 = scmp.ne.s32.totalorder %s52, %s53
      %p65 = scmp.eq.s32.totalorder %s22, 1
      %p66 = por %p64, %p65
      %p68 = scmp.ne.s32.totalorder %s53, %s67
      %p69 = scmp.eq.s32.totalorder %s22, 0
      %p70 = por %p68, %p69
      %s72 = sadd.s32 %s71, 1
      %p75 = scmp.eq.s32.totalorder %s16, 1
      %p76 = scmp.ne.s32.totalorder %s71, %s73
      %p77 = scmp.eq.s32.totalorder %s16, 0
      %p78 = por %p76, %p77
      %p79 = scmp.ne.s32.totalorder %s71, %s73
      %p80 = scmp.eq.s32.totalorder %s21, 1
      %p81 = por %p79, %p80
      %p82 = scmp.ne.s32.totalorder %s73, %s74
      %p83 = scmp.eq.s32.totalorder %s21, 0
      %p84 = por %p82, %p83
      %p85 = scmp.ne.s32.totalorder %s73, %s74
      %p86 = scmp.eq.s32.totalorder %s22, 1
      %p87 = por %p85, %p86
      %p89 = scmp.ne.s32.totalorder %s74, %s88
      %p90 = scmp.eq.s32.totalorder %s22, 0
      %p91 = por %p89, %p90
      %s92 = ssub.s32 %s16, %s23
      %p93 = scmp.eq.s32.totalorder %s92, 0
      %s95 = sadd.s32 %s94, 1
      %s96 = scalar_select %p93, %s94, %s95
      %p99 = pneg %p93
      %p100 = scmp.eq.s32.totalorder %s16, 1
      %p101 = por %p99, %p100
      %p102 = scmp.ne.s32.totalorder %s94, %s97
      %p103 = scmp.eq.s32.totalorder %s16, 0
      %p104 = por %p102, %p103
      %p105 = scmp.ne.s32.totalorder %s94, %s97
      %p106 = scmp.eq.s32.totalorder %s21, 1
      %p107 = por %p105, %p106
      %p108 = scmp.ne.s32.totalorder %s97, %s98
      %p109 = scmp.eq.s32.totalorder %s21, 0
      %p110 = por %p108, %p109
      %p111 = scmp.ne.s32.totalorder %s97, %s98
      %p112 = scmp.eq.s32.totalorder %s22, 1
      %p113 = por %p111, %p112
      %p115 = scmp.ne.s32.totalorder %s98, %s114
      %p116 = scmp.eq.s32.totalorder %s22, 0
      %p117 = por %p115, %p116
      %p118 = scmp.le.s32.totalorder 1, %s16
      %p119 = scmp.lt.s32.totalorder %s16, 3
      %p120 = pnand %p118, %p119
      %p121 = pneg %p120
      // Predicated region
      $region9: #{tpu_custom_call.1} parent=5 // pred_check
        _
      $region10: #{tpu_custom_call.1} parent=5 // pred_check_branch
        %123 = sbr.rel (%p120) target = $region12
      $region11: #{tpu_custom_call.1} parent=5 // pred_region
        %s124 = ssub.s32 %s16, 1
        // Predicated region
        $region13: #{tpu_custom_call.1} parent=11 // pred_check
          %p125 = pneg %p63
        $region14: #{tpu_custom_call.1} parent=11 // pred_check_branch
          %127 = sbr.rel (%p125) target = $region16
        $region15: #{tpu_custom_call.1} parent=11 // pred_region
          %s129 = ssub.s32 256, 256
          %130 = vsyncadd [#allocation6], %s129
          %s131 = sshll.u32 [#allocation5], 4
          %s132 = int_to_ptr.vmem [resolvable:$true] %s131
          %137 = dma.hbm_to_vmem [thread:$0]  %s1, 256, %s132, [#allocation6], 128, 128, 8
        $region16: #{tpu_custom_call.1} parent=11 // pred_fallthru
          _
        // Predicated region
        $region17: #{tpu_custom_call.1} parent=11 // pred_check
          %p138 = pneg %p84
        $region18: #{tpu_custom_call.1} parent=11 // pred_check_branch
          %140 = sbr.rel (%p138) target = $region20
        $region19: #{tpu_custom_call.1} parent=11 // pred_region
          _
        $region20: #{tpu_custom_call.1} parent=11 // pred_fallthru
          _
      $region12: #{tpu_custom_call.1} parent=5 // pred_fallthru
        _
      %p141 = scmp.lt.s32.totalorder %s16, 2
      // Predicated region
      $region21: #{tpu_custom_call.1} parent=5 // pred_check
        %p142 = pneg %p141
      $region22: #{tpu_custom_call.1} parent=5 // pred_check_branch
        %144 = sbr.rel (%p142) target = $region24
      $region23: #{tpu_custom_call.1} parent=5 // pred_region
        // Predicated region
        $region25: #{tpu_custom_call.1} parent=23 // pred_check
          %p145 = pneg %p36
        $region26: #{tpu_custom_call.1} parent=23 // pred_check_branch
          %147 = sbr.rel (%p145) target = $region28
        $region27: #{tpu_custom_call.1} parent=23 // pred_region
          %s148 = sand.u32 %s26, 1
          %s149 = scalar_lea.sflag [#allocation3], %s148
          %s150 = sand.u32 %s26, 1
          %s151 = smul.addr %s150, 8
          %s152 = scalar_lea.vmem [#allocation2], %s151
          %s154 = ssub.s32 128, 128
          %155 = vsyncadd %s149, %s154
          %s156 = smul.addr %s16, 128
          %s157 = scalar_lea.hbm %s0, %s156
          %s159 = sshll.u32 %s152, 4
          %s160 = int_to_ptr.vmem [resolvable:$true] %s159
          %162 = dma.hbm_to_vmem [thread:$0]  %s157, 128, %s160, %s149
        $region28: #{tpu_custom_call.1} parent=23 // pred_fallthru
          _
      $region24: #{tpu_custom_call.1} parent=5 // pred_fallthru
        _
      %p163 = scmp.le.s32.totalorder 1, %s16
      %p164 = scmp.lt.s32.totalorder %s16, 3
      %p165 = pnand %p163, %p164
      %p166 = pneg %p165
      // Predicated region
      $region29: #{tpu_custom_call.1} parent=5 // pred_check
        _
      $region30: #{tpu_custom_call.1} parent=5 // pred_check_branch
        %168 = sbr.rel (%p165) target = $region32
      $region31: #{tpu_custom_call.1} parent=5 // pred_region
        %s169 = ssub.s32 %s16, 1
        %s170 = sand.u32 %s29, 1
        %s171 = scalar_lea.sflag [#allocation3], %s170
        %s172 = sand.u32 %s29, 1
        %s173 = smul.addr %s172, 8
        %s174 = scalar_lea.vmem [#allocation2], %s173
        // Predicated region
        $region33: #{tpu_custom_call.1} parent=31 // pred_check
          %p175 = pneg %p42
        $region34: #{tpu_custom_call.1} parent=31 // pred_check_branch
          %177 = sbr.rel (%p175) target = $region36
        $region35: #{tpu_custom_call.1} parent=31 // pred_region
          %178 = dma.done %s171, 128
        $region36: #{tpu_custom_call.1} parent=31 // pred_fallthru
          _
        // Predicated region
        $region37: #{tpu_custom_call.1} parent=31 // pred_check
          %p179 = pneg %p63
        $region38: #{tpu_custom_call.1} parent=31 // pred_check_branch
          %181 = sbr.rel (%p179) target = $region40
        $region39: #{tpu_custom_call.1} parent=31 // pred_region
          %182 = dma.done [#allocation6], 256
        $region40: #{tpu_custom_call.1} parent=31 // pred_fallthru
          _
        %s183 = sand.u32 %s29, 1
        %s184 = scalar_lea.sflag [#allocation3], %s183
        %s185 = sand.u32 %s29, 1
        %s186 = smul.addr %s185, 8
        %s187 = scalar_lea.vmem [#allocation2], %s186
        %p188 = pneg %p42
        %p189 = pneg %p39
        %p190 = pneg %p63
        %p191 = pneg %p60
        %p192 = pneg %p84
        %p193 = pneg %p81
        %p194 = pneg %p110
        %p195 = pneg %p107
        %s196 = sand.u32 %s97, 1
        %s197 = scalar_lea.sflag [#allocation4], %s196
        %s198 = sand.u32 %s97, 1
        %s199 = smul.addr %s198, 8
        %s200 = scalar_lea.vmem [#allocation7], %s199
        %v201 = vld [vmem:[%s174] sm:$0xff]
        %v202 = vld [vmem:[#allocation5] sm:$0xff]
        %v203 = vld [vmem:[#allocation5 + $0x8] sm:$0xff]
        %v204 = vld [vmem:[%s2] sm:$0x1]
        %v206 = vlaneseq
        %v207 = vshrl.u32 %v206, 7
        %v208 = vsub.s32 0, %v207
        %v209 = vrot.slane %v204, %v208
        %vm211 = vcmask 261120
        %v213 = vsel %vm211, %v201, 0
        %v216 = vsel %vm211, %v202, 0
        %v219 = vsel %vm211, %v203, 0
        %221 = vmatprep.subr.mxu0 0.0
        %222 = vmatpush1.xpose.msra.mxu0 %v216
        %223 = vmatprep.subr.mxu0 0.0
        %224 = vmatpush1.xpose.msra.mxu0 %v219
        %225 = vmatprep.subr.mxu0 0.0
        %226 = vmatpush1.xpose.msra.mxu0 0.0
        %227 = vmatprep.subr.mxu0 0.0
        %228 = vmatpush1.xpose.msra.mxu0 0.0
        %229 = vmatprep.subr.mxu0 0.0
        %230 = vmatpush1.xpose.msra.mxu0 0.0
        %231 = vmatprep.subr.mxu0 0.0
        %232 = vmatpush1.xpose.msra.mxu0 0.0
        %233 = vmatprep.subr.mxu0 0.0
        %234 = vmatpush1.xpose.msra.mxu0 0.0
        %235 = vmatprep.subr.mxu0 0.0
        %236 = vmatpush1.xpose.msra.mxu0 0.0
        %237 = vmatprep.subr.mxu0 0.0
        %238 = vmatpush1.xpose.msra.mxu0 0.0
        %239 = vmatprep.subr.mxu0 0.0
        %240 = vmatpush1.xpose.msra.mxu0 0.0
        %241 = vmatprep.subr.mxu0 0.0
        %242 = vmatpush1.xpose.msra.mxu0 0.0
        %243 = vmatprep.subr.mxu0 0.0
        %244 = vmatpush1.xpose.msra.mxu0 0.0
        %245 = vmatprep.subr.mxu0 0.0
        %246 = vmatpush1.xpose.msra.mxu0 0.0
        %247 = vmatprep.subr.mxu0 0.0
        %248 = vmatpush1.xpose.msra.mxu0 0.0
        %249 = vmatprep.subr.mxu0 0.0
        %250 = vmatpush1.xpose.msra.mxu0 0.0
        %251 = vmatprep.subr.mxu0 0.0
        %252 = vmatpush1.xpose.msra.mxu0 0.0
        %253 = vmatprep.subr.mxu0 0.0
        %254 = vmatpush1.xpose.msra.mxu0 0.0
        %255 = vmatprep.subr.mxu0 0.0
        %256 = vmatpush1.xpose.msra.mxu0 0.0
        %257 = vmatprep.subr.mxu0 0.0
        %258 = vmatpush1.xpose.msra.mxu0 0.0
        %259 = vmatprep.subr.mxu0 0.0
        %260 = vmatpush1.xpose.msra.mxu0 0.0
        %261 = vmatprep.subr.mxu0 0.0
        %262 = vmatpush1.xpose.msra.mxu0 0.0
        %263 = vmatprep.subr.mxu0 0.0
        %264 = vmatpush1.xpose.msra.mxu0 0.0
        %265 = vmatprep.subr.mxu0 0.0
        %266 = vmatpush1.xpose.msra.mxu0 0.0
        %267 = vmatprep.subr.mxu0 0.0
        %268 = vmatpush1.xpose.msra.mxu0 0.0
        %269 = vmatprep.subr.mxu0 0.0
        %270 = vmatpush1.xpose.msra.mxu0 0.0
        %271 = vmatprep.subr.mxu0 0.0
        %272 = vmatpush1.xpose.msra.mxu0 0.0
        %273 = vmatprep.subr.mxu0 0.0
        %274 = vmatpush1.xpose.msra.mxu0 0.0
        %275 = vmatprep.subr.mxu0 0.0
        %276 = vmatpush1.xpose.msra.mxu0 0.0
        %277 = vmatprep.subr.mxu0 0.0
        %278 = vmatpush1.xpose.msra.mxu0 0.0
        %279 = vmatprep.subr.mxu0 0.0
        %280 = vmatpush1.xpose.msra.mxu0 0.0
        %281 = vmatprep.subr.mxu0 0.0
        %282 = vmatpush1.xpose.msra.mxu0 0.0
        %283 = vmatprep.subr.mxu0 0.0
        %284 = vmatpush1.xpose.msra.mxu0 0.0
        %285 = vmatprep.mubr.f32.mxu0 0.0
        %286 = vmatmul.mubr.f32.gmra.mrb[0].mxu0 %v213
        %v287 = vpop.f32.mrb[0].mxu0
        %v288 = vadd.f32 %v209, %v287
        %v289 = vpop.f32.mrb[0].mxu0
        %290 = vdwg.mxu0
        %vm291 = vcmask 130048
        %292 = vst.msk [vmem:[%s200] sm:$0xff] %vm291, %v288
        %s293 = sand.u32 %s97, 1
        %s294 = scalar_lea.sflag [#allocation4], %s293
        %s295 = sand.u32 %s97, 1
        %s296 = smul.addr %s295, 8
        %s297 = scalar_lea.vmem [#allocation7], %s296
        // Predicated region
        $region41: #{tpu_custom_call.1} parent=31 // pred_check
          %p298 = pneg %p107
        $region42: #{tpu_custom_call.1} parent=31 // pred_check_branch
          %300 = sbr.rel (%p298) target = $region44
        $region43: #{tpu_custom_call.1} parent=31 // pred_region
          %s302 = ssub.s32 128, 128
          %303 = vsyncadd %s294, %s302
          %s304 = smul.addr %s21, 128
          %s305 = scalar_lea.hbm %s3, %s304
          %s307 = sshll.u32 %s297, 4
          %s308 = int_to_ptr.vmem [resolvable:$true] %s307
          %310 = dma.vmem_to_hbm [thread:$0]  %s308, 128, %s305, %s294
        $region44: #{tpu_custom_call.1} parent=31 // pred_fallthru
          _
      $region32: #{tpu_custom_call.1} parent=5 // pred_fallthru
        _
      %p311 = scmp.le.s32.totalorder 2, %s16
      // Predicated region
      $region45: #{tpu_custom_call.1} parent=5 // pred_check
        %p312 = pneg %p311
      $region46: #{tpu_custom_call.1} parent=5 // pred_check_branch
        %314 = sbr.rel (%p312) target = $region48
      $region47: #{tpu_custom_call.1} parent=5 // pred_region
        %s315 = ssub.s32 %s16, 2
        // Predicated region
        $region49: #{tpu_custom_call.1} parent=47 // pred_check
          %p316 = pneg %p113
        $region50: #{tpu_custom_call.1} parent=47 // pred_check_branch
          %318 = sbr.rel (%p316) target = $region52
        $region51: #{tpu_custom_call.1} parent=47 // pred_region
          %s319 = sand.u32 %s98, 1
          %s320 = scalar_lea.sflag [#allocation4], %s319
          %s321 = sand.u32 %s98, 1
          %s322 = smul.addr %s321, 8
          %s323 = scalar_lea.vmem [#allocation7], %s322
          %324 = dma.done %s320, 128
        $region52: #{tpu_custom_call.1} parent=47 // pred_fallthru
          _
      $region48: #{tpu_custom_call.1} parent=5 // pred_fallthru
        _
    $region6: #{tpu_custom_call.1} parent=1 // loop_footer
      %s20 = sadd.s32 1, %s16
    $region7: #{tpu_custom_call.1} parent=1 // loop_footer_branch
      %15 = sbr.rel target = $region3
    $region8: #{tpu_custom_call.1} parent=1 // loop_exit
      _
    %325 = vsyncpa [#allocation3], 1
    %s326 = scalar_lea.sflag [#allocation3], 1
    %327 = vsyncpa %s326, 1
    %328 = vsyncpa [#allocation6], 1
    %329 = vsyncpa [#allocation4], 1
    %s330 = scalar_lea.sflag [#allocation4], 1
    %331 = vsyncpa %s330, 1

</llo_original>
